<compile_context>
chip_gen: v7x
topology: tpu7x:2x2x1
jax: 0.10.0
libtpu: 0.0.40
codegen_flags: <defaults>
</compile_context>

<pallas_src>
import functools

import jax
import jax.numpy as jnp
from jax import lax
from jax.experimental import pallas as pl
from jax.experimental.pallas import tpu as pltpu

EPS = 1e-5


# ----------------------------- fused Pallas kernel -------------------------- #

def _basic_block_kernel(x_ref, t1_ref, b1_ref, t2_ref, b2_ref, o_ref, pad_s,
                        *, Nb, H, P):
    """Fused BasicBlock: conv3x3+bn1+relu -> conv3x3+bn2 -> +identity -> relu.

    x_ref : (Nb, H, P)        bf16  lane-packed NHWC activations, P = W*C
    t1/t2 : (3*P, P)          bf16  block-Toeplitz conv weights (BN scale folded)
    b1/b2 : (1, P)            f32   W-tiled folded BN biases
    o_ref : (Nb, H, P)        bf16
    pad_s : VMEM (Nb, H+2, P) bf16  H-halo scratch, reused for both convs
    """
    cdt = pad_s.dtype

    # Zero ONLY the two halo rows (interior is fully overwritten below).  Per-step
    # (tiny) rather than once-at-program_id==0, so it is safe under megacore split.
    zero_row = jnp.zeros((Nb, 1, P), cdt)
    pad_s[:, 0:1, :] = zero_row
    pad_s[:, H + 1:H + 2, :] = zero_row

    x = x_ref[...]                                    # (Nb, H, P) bf16
    pad_s[:, 1:H + 1, :] = x

    def conv3x3(t_ref):
        # K-dim concat of the 3 H-taps (128-aligned lane offsets) then ONE MXU
        # matmul with K = 3*P; the W-taps + channel mixing live in the
        # block-Toeplitz weights, so there is no im2col relayout at all.
        a = jnp.concatenate(
            [pad_s[:, kh:kh + H, :].reshape(Nb * H, P) for kh in range(3)],
            axis=-1)                                   # (Nb*H, 3P) bf16
        y = jnp.dot(a, t_ref[...], preferred_element_type=jnp.float32)
        return y.reshape(Nb, H, P)                     # f32

    # conv1 + bn1 (scale folded into t1) + relu, epilogue in packed layout.
    mid = jnp.maximum(conv3x3(t1_ref) + b1_ref[...].reshape(1, 1, P), 0.0)
    pad_s[:, 1:H + 1, :] = mid.astype(cdt)             # reuse the same scratch

    # conv2 + bn2 + residual + relu, all f32 in the packed layout; residual reuses
    # the already-loaded x (bf16 error < bf16 output quantization).
    out = conv3x3(t2_ref) + b2_ref[...].reshape(1, 1, P) + x.astype(jnp.float32)
    o_ref[...] = jnp.maximum(out, 0.0).astype(o_ref.dtype)


# ------------------------------ wrapper / glue ------------------------------ #

def _fold_bn(gamma, beta, mean, var):
    scale = gamma / jnp.sqrt(var + EPS)
    return scale, beta - mean * scale


def _toeplitz_weights(w_oihw, scale, W, dtype):
    """Fold BN scale and the 3 W-direction taps (incl. W-boundary zero padding)
    into a (3*W*Cin, W*Cout) block-Toeplitz matrix -> one lane-dense MXU matmul
    per conv.  Built once at trace time."""
    # OIHW -> (kh, kw, ci, co), BN scale folded into output channels.
    wf = jnp.transpose(w_oihw, (2, 3, 1, 0)) * scale[None, None, None, :]
    blocks = []
    for kh in range(3):
        # S_kw[w_in, w_out] = 1 iff w_in - w_out == kw - 1 (zero at the W borders).
        t_kh = sum(jnp.kron(jnp.eye(W, k=-(kw - 1), dtype=wf.dtype), wf[kh, kw])
                   for kw in range(3))                 # (W*Ci, W*Co)
        blocks.append(t_kh)
    return jnp.concatenate(blocks, axis=0).astype(dtype)   # (3*W*Ci, W*Co)


def basic_block_forward(x_nchw, params, *, block_images=2,
                        compute_dtype=jnp.bfloat16, return_packed=False):
    """BasicBlock(stride=1, downsample=None) forward; x is NCHW (PyTorch)."""
    N, C, H, W = x_nchw.shape
    P = W * C
    assert P % 128 == 0, "packed W*C must be lane-aligned (see TODO for general shapes)"
    Nb = block_images if N % block_images == 0 else 1

    s1, b1 = _fold_bn(params["g1"], params["be1"], params["m1"], params["v1"])
    s2, b2 = _fold_bn(params["g2"], params["be2"], params["m2"], params["v2"])

    t1 = _toeplitz_weights(params["w1"], s1, W, compute_dtype)     # (3P, P) bf16
    t2 = _toeplitz_weights(params["w2"], s2, W, compute_dtype)
    b1p = jnp.tile(b1, W).reshape(1, P).astype(jnp.float32)        # W-tiled (1, P)
    b2p = jnp.tile(b2, W).reshape(1, P).astype(jnp.float32)

    # NCHW -> lane-packed (N, H, W*C) bf16 (transpose+cast fused by XLA).
    x_packed = (jnp.transpose(x_nchw, (0, 2, 3, 1))
                .reshape(N, H, P).astype(compute_dtype))

    kernel = functools.partial(_basic_block_kernel, Nb=Nb, H=H, P=P)
    out_packed = pl.pallas_call(
        kernel,
        out_shape=jax.ShapeDtypeStruct((N, H, P), compute_dtype),   # bf16 writeback
        grid_spec=pltpu.PrefetchScalarGridSpec(
            num_scalar_prefetch=0,
            grid=(N // Nb,),
            in_specs=[
                pl.BlockSpec((Nb, H, P), lambda n: (n, 0, 0)),
                pl.BlockSpec((3 * P, P), lambda n: (0, 0)),
                pl.BlockSpec((1, P), lambda n: (0, 0)),
                pl.BlockSpec((3 * P, P), lambda n: (0, 0)),
                pl.BlockSpec((1, P), lambda n: (0, 0)),
            ],
            out_specs=pl.BlockSpec((Nb, H, P), lambda n: (n, 0, 0)),
            scratch_shapes=[pltpu.VMEM((Nb, H + 2, P), compute_dtype)],
        ),
        compiler_params=pltpu.CompilerParams(
            dimension_semantics=("parallel",),      # even grid -> both v7x TCs fed
            vmem_limit_bytes=32 * 1024 * 1024,      # well under v7x's 64 MiB/TC
        ),
    )(x_packed, t1, b1p, t2, b2p)

    if return_packed:
        # Preferred production path: hand the packed bf16 activations to the next
        # block, avoiding the NCHW<->NHWC HBM round-trips entirely.
        return out_packed
    out = out_packed.reshape(N, H, W, C)
    return jnp.transpose(out, (0, 3, 1, 2)).astype(x_nchw.dtype)   # back to NCHW


# ------------------------------ pure-JAX reference -------------------------- #

def _ref_forward(x, params):
    def conv(z, w_oihw):
        return lax.conv_general_dilated(
            z, w_oihw, (1, 1), ((1, 1), (1, 1)),
            dimension_numbers=("NCHW", "OIHW", "NCHW"))

    def bn(z, g, be, m, v):
        s = g / jnp.sqrt(v + EPS)
        return z * s[None, :, None, None] + (be - m * s)[None, :, None, None]

    out = jnp.maximum(bn(conv(x, params["w1"]), params["g1"], params["be1"],
                         params["m1"], params["v1"]), 0.0)
    out = bn(conv(out, params["w2"]), params["g2"], params["be2"],
             params["m2"], params["v2"])
    return jnp.maximum(out + x, 0.0)


# ----------------------------------- main ----------------------------------- #

if __name__ == "__main__":
    # inplanes == planes, stride=1; W*C = 128 lanes; grid = N/Nb = 2 (even).
    N, C, H, W = 4, 8, 16, 16
    key = jax.random.PRNGKey(0)
    ks = jax.random.split(key, 11)

    params = {
        "w1": 0.1 * jax.random.normal(ks[0], (C, C, 3, 3), jnp.float32),
        "w2": 0.1 * jax.random.normal(ks[1], (C, C, 3, 3), jnp.float32),
        "g1": jax.random.uniform(ks[2], (C,), jnp.float32, 0.5, 1.5),
        "be1": 0.1 * jax.random.normal(ks[3], (C,), jnp.float32),
        "m1": 0.1 * jax.random.normal(ks[4], (C,), jnp.float32),
        "v1": jax.random.uniform(ks[5], (C,), jnp.float32, 0.5, 1.5),
        "g2": jax.random.uniform(ks[6], (C,), jnp.float32, 0.5, 1.5),
        "be2": 0.1 * jax.random.normal(ks[7], (C,), jnp.float32),
        "m2": 0.1 * jax.random.normal(ks[8], (C,), jnp.float32),
        "v2": jax.random.uniform(ks[9], (C,), jnp.float32, 0.5, 1.5),
    }
    x = jax.random.normal(ks[10], (N, C, H, W), jnp.float32)

    out = jax.block_until_ready(basic_block_forward(x, params))
    ref = jax.block_until_ready(_ref_forward(x, params))

    assert out.shape == (N, C, H, W)
    # bf16 activations/weights on the MXU + bf16 output -> loosened tolerance.
    assert jnp.allclose(out, ref, atol=5e-2, rtol=5e-2), (
        float(jnp.max(jnp.abs(out - ref))))
    print("KERNEL_OK")
</pallas_src>

<mosaic_0001>
module attributes {stable_mosaic.version = 11 : i64} {
  func.func @_basic_block_kernel(%arg0: i32, %arg1: memref<2x16x128xbf16, #tpu.memory_space<vmem>>, %arg2: memref<384x128xbf16, #tpu.memory_space<vmem>>, %arg3: memref<1x128xf32, #tpu.memory_space<vmem>>, %arg4: memref<384x128xbf16, #tpu.memory_space<vmem>>, %arg5: memref<1x128xf32, #tpu.memory_space<vmem>>, %arg6: memref<2x16x128xbf16, #tpu.memory_space<vmem>>, %arg7: memref<2x18x128xbf16, #tpu.memory_space<vmem>>) attributes {dimension_semantics = [#tpu.dimension_semantics<parallel>], iteration_bounds = array<i64: 2>, scalar_prefetch = 0 : i64, scratch_operands = 1 : i64, tpu.core_type = #tpu.core_type<tc>, window_params = [{transform_indices = @transform_0, window_bounds = array<i64: 2, 16, 128>}, {pipeline_mode = #tpu.pipeline_mode<synchronous>, transform_indices = @transform_1, window_bounds = array<i64: 384, 128>}, {pipeline_mode = #tpu.pipeline_mode<synchronous>, transform_indices = @transform_2, window_bounds = array<i64: 1, 128>}, {pipeline_mode = #tpu.pipeline_mode<synchronous>, transform_indices = @transform_3, window_bounds = array<i64: 384, 128>}, {pipeline_mode = #tpu.pipeline_mode<synchronous>, transform_indices = @transform_4, window_bounds = array<i64: 1, 128>}, {transform_indices = @transform_5, window_bounds = array<i64: 2, 16, 128>}]} {
    %cst = arith.constant 0.000000e+00 : bf16
    %0 = vector.broadcast %cst : bf16 to vector<2x1x128xbf16>
    %c0 = arith.constant 0 : index
    %c0_0 = arith.constant 0 : index
    %c0_1 = arith.constant 0 : index
    %1 = vector.load %arg7[%c0, %c0_0, %c0_1] : memref<2x18x128xbf16, #tpu.memory_space<vmem>>, vector<2x1x128xbf16>
    tpu.vector_store %arg7[%c0, %c0_0, %c0_1], %0 {strides = array<i32>} : memref<2x18x128xbf16, #tpu.memory_space<vmem>>, vector<2x1x128xbf16>,
    %c0_2 = arith.constant 0 : index
    %c17 = arith.constant 17 : index
    %c0_3 = arith.constant 0 : index
    %2 = vector.load %arg7[%c0_2, %c17, %c0_3] : memref<2x18x128xbf16, #tpu.memory_space<vmem>>, vector<2x1x128xbf16>
    tpu.vector_store %arg7[%c0_2, %c17, %c0_3], %0 {strides = array<i32>} : memref<2x18x128xbf16, #tpu.memory_space<vmem>>, vector<2x1x128xbf16>,
    %c0_4 = arith.constant 0 : index
    %c0_5 = arith.constant 0 : index
    %c0_6 = arith.constant 0 : index
    %3 = vector.load %arg1[%c0_4, %c0_5, %c0_6] : memref<2x16x128xbf16, #tpu.memory_space<vmem>>, vector<2x16x128xbf16>
    %c0_7 = arith.constant 0 : index
    %c1 = arith.constant 1 : index
    %c0_8 = arith.constant 0 : index
    %4 = vector.load %arg7[%c0_7, %c1, %c0_8] : memref<2x18x128xbf16, #tpu.memory_space<vmem>>, vector<2x16x128xbf16>
    tpu.vector_store %arg7[%c0_7, %c1, %c0_8], %3 {strides = array<i32>} : memref<2x18x128xbf16, #tpu.memory_space<vmem>>, vector<2x16x128xbf16>,
    %c0_9 = arith.constant 0 : index
    %c0_10 = arith.constant 0 : index
    %c0_11 = arith.constant 0 : index
    %5 = vector.load %arg7[%c0_9, %c0_10, %c0_11] : memref<2x18x128xbf16, #tpu.memory_space<vmem>>, vector<2x16x128xbf16>
    %6 = vector.shape_cast %5 : vector<2x16x128xbf16> to vector<32x128xbf16>
    %c0_12 = arith.constant 0 : index
    %c1_13 = arith.constant 1 : index
    %c0_14 = arith.constant 0 : index
    %7 = vector.load %arg7[%c0_12, %c1_13, %c0_14] : memref<2x18x128xbf16, #tpu.memory_space<vmem>>, vector<2x16x128xbf16>
    %8 = vector.shape_cast %7 : vector<2x16x128xbf16> to vector<32x128xbf16>
    %c0_15 = arith.constant 0 : index
    %c2 = arith.constant 2 : index
    %c0_16 = arith.constant 0 : index
    %9 = vector.load %arg7[%c0_15, %c2, %c0_16] : memref<2x18x128xbf16, #tpu.memory_space<vmem>>, vector<2x16x128xbf16>
    %10 = vector.shape_cast %9 : vector<2x16x128xbf16> to vector<32x128xbf16>
    %11 = tpu.concatenate %6, %8, %10 in 1 : vector<32x128xbf16>, vector<32x128xbf16>, vector<32x128xbf16> -> vector<32x384xbf16>
    %c0_17 = arith.constant 0 : index
    %c0_18 = arith.constant 0 : index
    %12 = vector.load %arg2[%c0_17, %c0_18] : memref<384x128xbf16, #tpu.memory_space<vmem>>, vector<384x128xbf16>
    %cst_19 = arith.constant dense<0.000000e+00> : vector<32x128xf32>
    %13 = tpu.matmul %11, %12, %cst_19 {dimension_numbers = #tpu.dot_dimension_numbers<[1], [0], [0], [1], [0, 0, 1, 1], [], []>} : vector<32x384xbf16>, vector<384x128xbf16>, vector<32x128xf32> -> vector<32x128xf32>
    %14 = vector.shape_cast %13 : vector<32x128xf32> to vector<2x16x128xf32>
    %c0_20 = arith.constant 0 : index
    %c0_21 = arith.constant 0 : index
    %15 = vector.load %arg3[%c0_20, %c0_21] : memref<1x128xf32, #tpu.memory_space<vmem>>, vector<1x128xf32>
    %16 = vector.shape_cast %15 : vector<1x128xf32> to vector<1x1x128xf32>
    %17 = vector.broadcast %16 : vector<1x1x128xf32> to vector<2x16x128xf32>
    %18 = arith.addf %14, %17 : vector<2x16x128xf32>
    %cst_22 = arith.constant 0.000000e+00 : f32
    %19 = vector.broadcast %cst_22 : f32 to vector<2x16x128xf32>
    %20 = arith.maximumf %18, %19 : vector<2x16x128xf32>
    %21 = arith.truncf %20 : vector<2x16x128xf32> to vector<2x16x128xbf16>
    %c0_23 = arith.constant 0 : index
    %c1_24 = arith.constant 1 : index
    %c0_25 = arith.constant 0 : index
    %22 = vector.load %arg7[%c0_23, %c1_24, %c0_25] : memref<2x18x128xbf16, #tpu.memory_space<vmem>>, vector<2x16x128xbf16>
    tpu.vector_store %arg7[%c0_23, %c1_24, %c0_25], %21 {strides = array<i32>} : memref<2x18x128xbf16, #tpu.memory_space<vmem>>, vector<2x16x128xbf16>,
    %c0_26 = arith.constant 0 : index
    %c0_27 = arith.constant 0 : index
    %c0_28 = arith.constant 0 : index
    %23 = vector.load %arg7[%c0_26, %c0_27, %c0_28] : memref<2x18x128xbf16, #tpu.memory_space<vmem>>, vector<2x16x128xbf16>
    %24 = vector.shape_cast %23 : vector<2x16x128xbf16> to vector<32x128xbf16>
    %c0_29 = arith.constant 0 : index
    %c1_30 = arith.constant 1 : index
    %c0_31 = arith.constant 0 : index
    %25 = vector.load %arg7[%c0_29, %c1_30, %c0_31] : memref<2x18x128xbf16, #tpu.memory_space<vmem>>, vector<2x16x128xbf16>
    %26 = vector.shape_cast %25 : vector<2x16x128xbf16> to vector<32x128xbf16>
    %c0_32 = arith.constant 0 : index
    %c2_33 = arith.constant 2 : index
    %c0_34 = arith.constant 0 : index
    %27 = vector.load %arg7[%c0_32, %c2_33, %c0_34] : memref<2x18x128xbf16, #tpu.memory_space<vmem>>, vector<2x16x128xbf16>
    %28 = vector.shape_cast %27 : vector<2x16x128xbf16> to vector<32x128xbf16>
    %29 = tpu.concatenate %24, %26, %28 in 1 : vector<32x128xbf16>, vector<32x128xbf16>, vector<32x128xbf16> -> vector<32x384xbf16>
    %c0_35 = arith.constant 0 : index
    %c0_36 = arith.constant 0 : index
    %30 = vector.load %arg4[%c0_35, %c0_36] : memref<384x128xbf16, #tpu.memory_space<vmem>>, vector<384x128xbf16>
    %cst_37 = arith.constant dense<0.000000e+00> : vector<32x128xf32>
    %31 = tpu.matmul %29, %30, %cst_37 {dimension_numbers = #tpu.dot_dimension_numbers<[1], [0], [0], [1], [0, 0, 1, 1], [], []>} : vector<32x384xbf16>, vector<384x128xbf16>, vector<32x128xf32> -> vector<32x128xf32>
    %32 = vector.shape_cast %31 : vector<32x128xf32> to vector<2x16x128xf32>
    %c0_38 = arith.constant 0 : index
    %c0_39 = arith.constant 0 : index
    %33 = vector.load %arg5[%c0_38, %c0_39] : memref<1x128xf32, #tpu.memory_space<vmem>>, vector<1x128xf32>
    %34 = vector.shape_cast %33 : vector<1x128xf32> to vector<1x1x128xf32>
    %35 = vector.broadcast %34 : vector<1x1x128xf32> to vector<2x16x128xf32>
    %36 = arith.addf %32, %35 : vector<2x16x128xf32>
    %37 = arith.extf %3 : vector<2x16x128xbf16> to vector<2x16x128xf32>
    %38 = arith.addf %36, %37 : vector<2x16x128xf32>
    %cst_40 = arith.constant 0.000000e+00 : f32
    %39 = vector.broadcast %cst_40 : f32 to vector<2x16x128xf32>
    %40 = arith.maximumf %38, %39 : vector<2x16x128xf32>
    %41 = arith.truncf %40 : vector<2x16x128xf32> to vector<2x16x128xbf16>
    %c0_41 = arith.constant 0 : index
    %c0_42 = arith.constant 0 : index
    %c0_43 = arith.constant 0 : index
    %42 = vector.load %arg6[%c0_41, %c0_42, %c0_43] : memref<2x16x128xbf16, #tpu.memory_space<vmem>>, vector<2x16x128xbf16>
    tpu.vector_store %arg6[%c0_41, %c0_42, %c0_43], %41 {strides = array<i32>} : memref<2x16x128xbf16, #tpu.memory_space<vmem>>, vector<2x16x128xbf16>,
    return
  }
  func.func @transform_0(%arg0: i32) -> (i32, i32, i32) {
    %c0_i32 = arith.constant 0 : i32
    %c0_i32_0 = arith.constant 0 : i32
    %c0_i32_1 = arith.constant 0 : i32
    return %arg0, %c0_i32, %c0_i32_0 : i32, i32, i32
  }
  func.func @transform_1(%arg0: i32) -> (i32, i32) {
    %c0_i32 = arith.constant 0 : i32
    %c0_i32_0 = arith.constant 0 : i32
    %c0_i32_1 = arith.constant 0 : i32
    return %c0_i32, %c0_i32_0 : i32, i32
  }
  func.func @transform_2(%arg0: i32) -> (i32, i32) {
    %c0_i32 = arith.constant 0 : i32
    %c0_i32_0 = arith.constant 0 : i32
    %c0_i32_1 = arith.constant 0 : i32
    return %c0_i32, %c0_i32_0 : i32, i32
  }
  func.func @transform_3(%arg0: i32) -> (i32, i32) {
    %c0_i32 = arith.constant 0 : i32
    %c0_i32_0 = arith.constant 0 : i32
    %c0_i32_1 = arith.constant 0 : i32
    return %c0_i32, %c0_i32_0 : i32, i32
  }
  func.func @transform_4(%arg0: i32) -> (i32, i32) {
    %c0_i32 = arith.constant 0 : i32
    %c0_i32_0 = arith.constant 0 : i32
    %c0_i32_1 = arith.constant 0 : i32
    return %c0_i32, %c0_i32_0 : i32, i32
  }
  func.func @transform_5(%arg0: i32) -> (i32, i32, i32) {
    %c0_i32 = arith.constant 0 : i32
    %c0_i32_0 = arith.constant 0 : i32
    %c0_i32_1 = arith.constant 0 : i32
    return %arg0, %c0_i32, %c0_i32_0 : i32, i32, i32
  }
}

</mosaic_0001>

<llo_original>
// kernel: tpu_custom_call.1
$region0: #{tpu_custom_call.1}
  #allocation0 [shape = 'u32[]', space=smem, size = 0x4, offset = 0x4, fixed_abs, tag = 'smem constant byte address 0x4 - core index']
  #allocation1 [shape = 'u32[144,128]{1,0:T(1,128)}', space=vmem, size = 0x12000, scoped, tag = 'internal scratch']
  #allocation2 [shape = 'bf16[2,18,128]{2,1,0:T(8,128)(2,1)}', space=vmem, size = 0x3000, scoped, tag = 'scratch operand']
  %s0 = inlined_call_operand.hbm [shape: bf16[4,16,128], index: 0, kind: input, shape index: {}]
  %s1 = inlined_call_operand.hbm [shape: bf16[384,128], index: 1, kind: input, shape index: {}]
  %s2 = inlined_call_operand.vmem [shape: f32[1,128], index: 2, kind: input, shape index: {}]
  %s3 = inlined_call_operand.hbm [shape: bf16[384,128], index: 3, kind: input, shape index: {}]
  %s4 = inlined_call_operand.vmem [shape: f32[1,128], index: 4, kind: input, shape index: {}]
  %s5 = inlined_call_operand.hbm [shape: bf16[4,16,128], index: 5, kind: output, shape index: {}]
  %s6 = sld [smem:[#allocation0]]
  $region65: #{tpu_custom_call.1} parent=0
    _
  %s8 = ssub.s32 1, %s6
  %s9 = scalar_select 0, %s8, %s6
  $region1: #{tpu_custom_call.1} parent=0
    #allocation3 [shape = 'u8[16384]{0}', space=vmem, size = 0x4000, scoped, tag = 'input window, operand 0']
    #allocation4 [shape = 's32[2]{0}', space=sflag, size = 0x8, scoped, tag = 'scoped memory for tpu_custom_call.1']
    #allocation5 [shape = 's32[2]{0}', space=sflag, size = 0x8, scoped, tag = 'scoped memory for tpu_custom_call.1']
    #allocation6 [shape = 'u8[98304]{0}', space=vmem, size = 0x18000, scoped, tag = 'input window, operand 1, single buffered']
    #allocation7 [shape = 's32[1]{0}', space=sflag, size = 0x4, scoped, tag = 'scoped memory for tpu_custom_call.1']
    #allocation8 [shape = 'u8[98304]{0}', space=vmem, size = 0x18000, scoped, tag = 'input window, operand 3, single buffered']
    #allocation9 [shape = 'u8[16384]{0}', space=vmem, size = 0x4000, scoped, tag = 'output window, operand 0']
    %10 = vsyncpa [#allocation4], 0
    %s11 = scalar_lea.sflag [#allocation4], 1
    %12 = vsyncpa %s11, 0
    %13 = vsyncpa [#allocation7], 0
    %14 = vsyncpa [#allocation5], 0
    %s15 = scalar_lea.sflag [#allocation5], 1
    %16 = vsyncpa %s15, 0
    loop: start=0, step=1, limit=4
    $region2: #{tpu_custom_call.1} parent=1 // loop_pre_header
      _
    $region3: #{tpu_custom_call.1} parent=1 // loop_header
      %s18 = sphi 0, %s22
      %p19 = scmp.ge.s32.totalorder %s18, 4
      %s28 = sphi 0, %s30
      %s31 = sphi 0, %s28
      %s32 = sphi 0, %s31
      %s48 = sphi 0, %s32
      %s52 = sphi 0, %s52
      %s54 = sphi 0, %s52
      %s55 = sphi 0, %s54
      %s69 = sphi 0, %s55
      %s73 = sphi 0, %s73
      %s75 = sphi 0, %s73
      %s76 = sphi 0, %s75
      %s90 = sphi 0, %s76
      %s94 = sphi 0, %s94
      %s96 = sphi 0, %s94
      %s97 = sphi 0, %s96
      %s111 = sphi 0, %s97
      %s115 = sphi 0, %s115
      %s117 = sphi 0, %s115
      %s118 = sphi 0, %s117
      %s132 = sphi 0, %s118
      %s138 = sphi 0, %s140
      %s141 = sphi 0, %s138
      %s142 = sphi 0, %s141
      %s158 = sphi 0, %s142
    $region4: #{tpu_custom_call.1} parent=1 // loop_header_branch
      %21 = sbr.rel (%p19) target = $region8
    $region5: #{tpu_custom_call.1} parent=1 // loop_body
      %s23 = ssub.s32 %s18, 1
      %s24 = ssub.s32 %s18, 2
      %s25 = sadd.s32 %s18, 1
      %s26 = ssub.s32 %s18, %s25
      %p27 = scmp.eq.s32.totalorder %s26, 0
      %s29 = sadd.s32 %s28, 1
      %s30 = scalar_select %p27, %s28, %s29
      %p33 = pneg %p27
      %p34 = scmp.eq.s32.totalorder %s18, 1
      %p35 = por %p33, %p34
      %p36 = scmp.ne.s32.totalorder %s28, %s31
      %p37 = scmp.eq.s32.totalorder %s18, 0
      %p38 = por %p36, %p37
      %p39 = scmp.ne.s32.totalorder %s28, %s31
      %p40 = scmp.eq.s32.totalorder %s23, 1
      %p41 = por %p39, %p40
      %p42 = scmp.ne.s32.totalorder %s31, %s32
      %p43 = scmp.eq.s32.totalorder %s23, 0
      %p44 = por %p42, %p43
      %p45 = scmp.ne.s32.totalorder %s31, %s32
      %p46 = scmp.eq.s32.totalorder %s24, 1
      %p47 = por %p45, %p46
      %p49 = scmp.ne.s32.totalorder %s32, %s48
      %p50 = scmp.eq.s32.totalorder %s24, 0
      %p51 = por %p49, %p50
      %s53 = sadd.s32 %s52, 1
      %p56 = scmp.eq.s32.totalorder %s18, 1
      %p57 = scmp.ne.s32.totalorder %s52, %s54
      %p58 = scmp.eq.s32.totalorder %s18, 0
      %p59 = por %p57, %p58
      %p60 = scmp.ne.s32.totalorder %s52, %s54
      %p61 = scmp.eq.s32.totalorder %s23, 1
      %p62 = por %p60, %p61
      %p63 = scmp.ne.s32.totalorder %s54, %s55
      %p64 = scmp.eq.s32.totalorder %s23, 0
      %p65 = por %p63, %p64
      %p66 = scmp.ne.s32.totalorder %s54, %s55
      %p67 = scmp.eq.s32.totalorder %s24, 1
      %p68 = por %p66, %p67
      %p70 = scmp.ne.s32.totalorder %s55, %s69
      %p71 = scmp.eq.s32.totalorder %s24, 0
      %p72 = por %p70, %p71
      %s74 = sadd.s32 %s73, 1
      %p77 = scmp.eq.s32.totalorder %s18, 1
      %p78 = scmp.ne.s32.totalorder %s73, %s75
      %p79 = scmp.eq.s32.totalorder %s18, 0
      %p80 = por %p78, %p79
      %p81 = scmp.ne.s32.totalorder %s73, %s75
      %p82 = scmp.eq.s32.totalorder %s23, 1
      %p83 = por %p81, %p82
      %p84 = scmp.ne.s32.totalorder %s75, %s76
      %p85 = scmp.eq.s32.totalorder %s23, 0
      %p86 = por %p84, %p85
      %p87 = scmp.ne.s32.totalorder %s75, %s76
      %p88 = scmp.eq.s32.totalorder %s24, 1
      %p89 = por %p87, %p88
      %p91 = scmp.ne.s32.totalorder %s76, %s90
      %p92 = scmp.eq.s32.totalorder %s24, 0
      %p93 = por %p91, %p92
      %s95 = sadd.s32 %s94, 1
      %p98 = scmp.eq.s32.totalorder %s18, 1
      %p99 = scmp.ne.s32.totalorder %s94, %s96
      %p100 = scmp.eq.s32.totalorder %s18, 0
      %p101 = por %p99, %p100
      %p102 = scmp.ne.s32.totalorder %s94, %s96
      %p103 = scmp.eq.s32.totalorder %s23, 1
      %p104 = por %p102, %p103
      %p105 = scmp.ne.s32.totalorder %s96, %s97
      %p106 = scmp.eq.s32.totalorder %s23, 0
      %p107 = por %p105, %p106
      %p108 = scmp.ne.s32.totalorder %s96, %s97
      %p109 = scmp.eq.s32.totalorder %s24, 1
      %p110 = por %p108, %p109
      %p112 = scmp.ne.s32.totalorder %s97, %s111
      %p113 = scmp.eq.s32.totalorder %s24, 0
      %p114 = por %p112, %p113
      %s116 = sadd.s32 %s115, 1
      %p119 = scmp.eq.s32.totalorder %s18, 1
      %p120 = scmp.ne.s32.totalorder %s115, %s117
      %p121 = scmp.eq.s32.totalorder %s18, 0
      %p122 = por %p120, %p121
      %p123 = scmp.ne.s32.totalorder %s115, %s117
      %p124 = scmp.eq.s32.totalorder %s23, 1
      %p125 = por %p123, %p124
      %p126 = scmp.ne.s32.totalorder %s117, %s118
      %p127 = scmp.eq.s32.totalorder %s23, 0
      %p128 = por %p126, %p127
      %p129 = scmp.ne.s32.totalorder %s117, %s118
      %p130 = scmp.eq.s32.totalorder %s24, 1
      %p131 = por %p129, %p130
      %p133 = scmp.ne.s32.totalorder %s118, %s132
      %p134 = scmp.eq.s32.totalorder %s24, 0
      %p135 = por %p133, %p134
      %s136 = ssub.s32 %s18, %s25
      %p137 = scmp.eq.s32.totalorder %s136, 0
      %s139 = sadd.s32 %s138, 1
      %s140 = scalar_select %p137, %s138, %s139
      %p143 = pneg %p137
      %p144 = scmp.eq.s32.totalorder %s18, 1
      %p145 = por %p143, %p144
      %p146 = scmp.ne.s32.totalorder %s138, %s141
      %p147 = scmp.eq.s32.totalorder %s18, 0
      %p148 = por %p146, %p147
      %p149 = scmp.ne.s32.totalorder %s138, %s141
      %p150 = scmp.eq.s32.totalorder %s23, 1
      %p151 = por %p149, %p150
      %p152 = scmp.ne.s32.totalorder %s141, %s142
      %p153 = scmp.eq.s32.totalorder %s23, 0
      %p154 = por %p152, %p153
      %p155 = scmp.ne.s32.totalorder %s141, %s142
      %p156 = scmp.eq.s32.totalorder %s24, 1
      %p157 = por %p155, %p156
      %p159 = scmp.ne.s32.totalorder %s142, %s158
      %p160 = scmp.eq.s32.totalorder %s24, 0
      %p161 = por %p159, %p160
      %p162 = scmp.le.s32.totalorder 1, %s18
      %p163 = scmp.lt.s32.totalorder %s18, 3
      %p164 = pnand %p162, %p163
      %p165 = pneg %p164
      // Predicated region
      $region9: #{tpu_custom_call.1} parent=5 // pred_check
        _
      $region10: #{tpu_custom_call.1} parent=5 // pred_check_branch
        %167 = sbr.rel (%p164) target = $region12
      $region11: #{tpu_custom_call.1} parent=5 // pred_region
        %s168 = ssub.s32 %s18, 1
        // Predicated region
        $region13: #{tpu_custom_call.1} parent=11 // pred_check
          %p169 = pneg %p65
        $region14: #{tpu_custom_call.1} parent=11 // pred_check_branch
          %171 = sbr.rel (%p169) target = $region16
        $region15: #{tpu_custom_call.1} parent=11 // pred_region
          %s173 = ssub.s32 3072, 3072
          %174 = vsyncadd [#allocation7], %s173
          %s175 = sshll.u32 [#allocation6], 4
          %s176 = int_to_ptr.vmem [resolvable:$true] %s175
          %181 = dma.hbm_to_vmem [thread:$0]  %s1, 3072, %s176, [#allocation7], 64, 64, 4
        $region16: #{tpu_custom_call.1} parent=11 // pred_fallthru
          _
        // Predicated region
        $region17: #{tpu_custom_call.1} parent=11 // pred_check
          %p182 = pneg %p86
        $region18: #{tpu_custom_call.1} parent=11 // pred_check_branch
          %184 = sbr.rel (%p182) target = $region20
        $region19: #{tpu_custom_call.1} parent=11 // pred_region
          _
        $region20: #{tpu_custom_call.1} parent=11 // pred_fallthru
          _
        // Predicated region
        $region21: #{tpu_custom_call.1} parent=11 // pred_check
          %p185 = pneg %p107
        $region22: #{tpu_custom_call.1} parent=11 // pred_check_branch
          %187 = sbr.rel (%p185) target = $region24
        $region23: #{tpu_custom_call.1} parent=11 // pred_region
          %s189 = ssub.s32 3072, 3072
          %190 = vsyncadd [#allocation7], %s189
          %s191 = sshll.u32 [#allocation8], 4
          %s192 = int_to_ptr.vmem [resolvable:$true] %s191
          %197 = dma.hbm_to_vmem [thread:$0]  %s3, 3072, %s192, [#allocation7], 64, 64, 4
        $region24: #{tpu_custom_call.1} parent=11 // pred_fallthru
          _
        // Predicated region
        $region25: #{tpu_custom_call.1} parent=11 // pred_check
          %p198 = pneg %p128
        $region26: #{tpu_custom_call.1} parent=11 // pred_check_branch
          %200 = sbr.rel (%p198) target = $region28
        $region27: #{tpu_custom_call.1} parent=11 // pred_region
          _
        $region28: #{tpu_custom_call.1} parent=11 // pred_fallthru
          _
      $region12: #{tpu_custom_call.1} parent=5 // pred_fallthru
        _
      %p201 = scmp.lt.s32.totalorder %s18, 2
      // Predicated region
      $region29: #{tpu_custom_call.1} parent=5 // pred_check
        %p202 = pneg %p201
      $region30: #{tpu_custom_call.1} parent=5 // pred_check_branch
        %204 = sbr.rel (%p202) target = $region32
      $region31: #{tpu_custom_call.1} parent=5 // pred_region
        // Predicated region
        $region33: #{tpu_custom_call.1} parent=31 // pred_check
          %p205 = pneg %p38
        $region34: #{tpu_custom_call.1} parent=31 // pred_check_branch
          %207 = sbr.rel (%p205) target = $region36
        $region35: #{tpu_custom_call.1} parent=31 // pred_region
          %s208 = sand.u32 %s28, 1
          %s209 = scalar_lea.sflag [#allocation4], %s208
          %s210 = sand.u32 %s28, 1
          %s211 = smul.addr %s210, 16
          %s212 = scalar_lea.vmem [#allocation3], %s211
          %s213 = smul.u32 2, %s18
          %s215 = ssub.s32 256, 256
          %216 = vsyncadd %s209, %s215
          %s217 = smul.addr %s213, 2
          %s218 = smul.addr %s217, 64
          %s219 = scalar_lea.hbm %s0, %s218
          %s220 = sshll.u32 %s212, 4
          %s221 = int_to_ptr.vmem [resolvable:$true] %s220
          %226 = dma.hbm_to_vmem [thread:$0]  %s219, 256, %s221, %s209, 64, 64, 4
        $region36: #{tpu_custom_call.1} parent=31 // pred_fallthru
          _
      $region32: #{tpu_custom_call.1} parent=5 // pred_fallthru
        _
      %p227 = scmp.le.s32.totalorder 1, %s18
      %p228 = scmp.lt.s32.totalorder %s18, 3
      %p229 = pnand %p227, %p228
      %p230 = pneg %p229
      // Predicated region
      $region37: #{tpu_custom_call.1} parent=5 // pred_check
        _
      $region38: #{tpu_custom_call.1} parent=5 // pred_check_branch
        %232 = sbr.rel (%p229) target = $region40
      $region39: #{tpu_custom_call.1} parent=5 // pred_region
        %s233 = ssub.s32 %s18, 1
        %s234 = sand.u32 %s31, 1
        %s235 = scalar_lea.sflag [#allocation4], %s234
        %s236 = sand.u32 %s31, 1
        %s237 = smul.addr %s236, 16
        %s238 = scalar_lea.vmem [#allocation3], %s237
        // Predicated region
        $region41: #{tpu_custom_call.1} parent=39 // pred_check
          %p239 = pneg %p44
        $region42: #{tpu_custom_call.1} parent=39 // pred_check_branch
          %241 = sbr.rel (%p239) target = $region44
        $region43: #{tpu_custom_call.1} parent=39 // pred_region
          %242 = dma.done %s235, 256
        $region44: #{tpu_custom_call.1} parent=39 // pred_fallthru
          _
        // Predicated region
        $region45: #{tpu_custom_call.1} parent=39 // pred_check
          %p243 = pneg %p65
        $region46: #{tpu_custom_call.1} parent=39 // pred_check_branch
          %245 = sbr.rel (%p243) target = $region48
        $region47: #{tpu_custom_call.1} parent=39 // pred_region
          %246 = dma.done [#allocation7], 3072
        $region48: #{tpu_custom_call.1} parent=39 // pred_fallthru
          _
        // Predicated region
        $region49: #{tpu_custom_call.1} parent=39 // pred_check
          %p247 = pneg %p107
        $region50: #{tpu_custom_call.1} parent=39 // pred_check_branch
          %249 = sbr.rel (%p247) target = $region52
        $region51: #{tpu_custom_call.1} parent=39 // pred_region
          %250 = dma.done [#allocation7], 3072
        $region52: #{tpu_custom_call.1} parent=39 // pred_fallthru
          _
        %s251 = sand.u32 %s31, 1
        %s252 = scalar_lea.sflag [#allocation4], %s251
        %s253 = sand.u32 %s31, 1
        %s254 = smul.addr %s253, 16
        %s255 = scalar_lea.vmem [#allocation3], %s254
        %p256 = pneg %p44
        %p257 = pneg %p41
        %p258 = pneg %p65
        %p259 = pneg %p62
        %p260 = pneg %p86
        %p261 = pneg %p83
        %p262 = pneg %p107
        %p263 = pneg %p104
        %p264 = pneg %p128
        %p265 = pneg %p125
        %p266 = pneg %p154
        %p267 = pneg %p151
        %s268 = sand.u32 %s141, 1
        %s269 = scalar_lea.sflag [#allocation5], %s268
        %s270 = sand.u32 %s141, 1
        %s271 = smul.addr %s270, 16
        %s272 = scalar_lea.vmem [#allocation9], %s271
        %s273 = smul.u32 2, %s23
        %s274 = smul.u32 2, %s23
        %vm276 = vcmask 1040384
        %vm277 = vsmask.f32 256
        %vm278 = vmand %vm276, %vm277
        %v279 = vld [vmem:[#allocation2] sm:$0x1]
        %v280 = vsel %vm278, 0, %v279
        %281 = vst [vmem:[#allocation2] sm:$0x1] %v280
        %v282 = vld [vmem:[#allocation2 + $0xc] sm:$0x1]
        %v283 = vsel %vm278, 0, %v282
        %284 = vst [vmem:[#allocation2 + $0xc] sm:$0x1] %v283
        %vm285 = vsmask.f32 7938
        %vm286 = vmand %vm276, %vm285
        %v287 = vld [vmem:[#allocation2 + $0x8] sm:$0x1]
        %v288 = vsel %vm286, 0, %v287
        %289 = vst [vmem:[#allocation2 + $0x8] sm:$0x1] %v288
        %v290 = vld [vmem:[#allocation2 + $0x14] sm:$0x1]
        %v291 = vsel %vm286, 0, %v290
        %292 = vst [vmem:[#allocation2 + $0x14] sm:$0x1] %v291
        %v293 = vld [vmem:[%s238] sm:$0xf]
        %v294 = vld [vmem:[%s238 + $0x4] sm:$0xf]
        %v295 = vld [vmem:[%s238 + $0x8] sm:$0xf]
        %v296 = vld [vmem:[%s238 + $0xc] sm:$0xf]
        %vm297 = vsmask.f32 4368
        %vm298 = vmor %vm277, %vm297
        %v300 = vshrl.u32 %v293, 16
        %v302 = vrot.slane %v300, 7
        %v303 = vshll.u32 %v293, 16
        %v305 = vor.u32 %v302, %v303
        %v306 = vrot.slane %v302, 4
        %v308 = vshrl.u32 %v294, 16
        %v310 = vrot.slane %v308, 7
        %v311 = vshll.u32 %v294, 16
        %v313 = vor.u32 %v310, %v311
        %v314 = vsel %vm298, %v306, %v313
        %v315 = vrot.slane %v310, 4
        %v317 = vshrl.u32 %v295, 16
        %v319 = vrot.slane %v317, 7
        %v320 = vshll.u32 %v295, 16
        %v322 = vor.u32 %v319, %v320
        %v323 = vrot.slane %v319, 4
        %v325 = vshrl.u32 %v296, 16
        %v327 = vrot.slane %v325, 7
        %v328 = vshll.u32 %v296, 16
        %v330 = vor.u32 %v327, %v328
        %v331 = vsel %vm298, %v323, %v330
        %v332 = vrot.slane %v327, 4
        %vm339 = vcmask 1043456
        %vm340 = vmand %vm339, %vm285
        %v341 = vld [vmem:[#allocation2] sm:$0xf]
        %v342 = vsel %vm340, %v305, %v341
        %343 = vst [vmem:[#allocation2] sm:$0xf] %v342
        %344 = vst [vmem:[#allocation2 + $0x4] sm:$0xf] %v314
        %v345 = vld [vmem:[#allocation2 + $0x8] sm:$0x1]
        %v346 = vsel %vm278, %v315, %v345
        %347 = vst [vmem:[#allocation2 + $0x8] sm:$0x1] %v346
        %v348 = vld [vmem:[#allocation2 + $0xc] sm:$0xf]
        %v349 = vsel %vm340, %v322, %v348
        %350 = vst [vmem:[#allocation2 + $0xc] sm:$0xf] %v349
        %351 = vst [vmem:[#allocation2 + $0x10] sm:$0xf] %v331
        %v352 = vld [vmem:[#allocation2 + $0x14] sm:$0x1]
        %v353 = vsel %vm278, %v332, %v352
        %354 = vst [vmem:[#allocation2 + $0x14] sm:$0x1] %v353
        %v355 = vld [vmem:[#allocation2] sm:$0xf]
        %v356 = vld [vmem:[#allocation2 + $0x4] sm:$0xf]
        %v357 = vld [vmem:[#allocation2 + $0xc] sm:$0xf]
        %v358 = vld [vmem:[#allocation2 + $0x10] sm:$0xf]
        %v359 = vld [vmem:[#allocation2 + $0x8] sm:$0x1]
        %v360 = vld [vmem:[#allocation2 + $0x14] sm:$0x1]
        %vm361 = vsmask.f32 3328
        %vm362 = vsmask.f32 7440
        %vm363 = vmor %vm361, %vm362
        %v365 = vshrl.u32 %v355, 16
        %v367 = vrot.slane %v365, 4
        %v368 = vshll.u32 %v355, 16
        %v370 = vrot.slane %v368, 5
        %v371 = vor.u32 %v367, %v370
        %v372 = vrot.slane %v371, 4
        %v374 = vshll.u32 %v356, 16
        %v376 = vrot.slane %v374, 5
        %v377 = vsel %vm363, %v372, %v376
        %v378 = vshrl.u32 %v356, 16
        %v380 = vrot.slane %v378, 4
        %v381 = vor.u32 %v380, %v376
        %v382 = vrot.slane %v381, 4
        %v384 = vshll.u32 %v359, 16
        %v386 = vrot.slane %v384, 5
        %v387 = vsel %vm363, %v382, %v386
        %v389 = vshrl.u32 %v357, 16
        %v391 = vrot.slane %v389, 4
        %v392 = vshll.u32 %v357, 16
        %v394 = vrot.slane %v392, 5
        %v395 = vor.u32 %v391, %v394
        %v396 = vrot.slane %v395, 4
        %v398 = vshll.u32 %v358, 16
        %v400 = vrot.slane %v398, 5
        %v401 = vsel %vm363, %v396, %v400
        %v402 = vshrl.u32 %v358, 16
        %v404 = vrot.slane %v402, 4
        %v405 = vor.u32 %v404, %v400
        %v406 = vrot.slane %v405, 4
        %v408 = vshll.u32 %v360, 16
        %v410 = vrot.slane %v408, 5
        %v411 = vsel %vm363, %v406, %v410
        %v412 = vld [vmem:[#allocation2] sm:$0xe]
        %v413 = vld [vmem:[#allocation2 + $0xc] sm:$0xe]
        %vm420 = vcmask 1042432
        %vm421 = vcmask 1046532
        %vm422 = vmor %vm420, %vm421
        %v423 = vrot.slane %v412, 5
        %v424 = vrot.slane %v423, 4
        %v425 = vrot.slane %v356, 5
        %v426 = vsel %vm422, %v424, %v425
        %v427 = vrot.slane %v425, 4
        %v428 = vrot.slane %v359, 5
        %v429 = vsel %vm422, %v427, %v428
        %v430 = vrot.slane %v413, 5
        %v431 = vrot.slane %v430, 4
        %v432 = vrot.slane %v358, 5
        %v433 = vsel %vm422, %v431, %v432
        %v434 = vrot.slane %v432, 4
        %v435 = vrot.slane %v360, 5
        %v436 = vsel %vm422, %v434, %v435
        %v439 = vunpack.c.l.b16 %v355
        %v440 = vunpack.c.l.b16 %v356
        %v441 = vunpack.c.l.b16 %v357
        %v442 = vunpack.c.l.b16 %v358
        %v443 = vpack.c.b16 %v440, %v439
        %v444 = vpack.c.b16 %v442, %v441
        %v447 = vunpack.c.l.b16 %v377
        %v448 = vunpack.c.l.b16 %v387
        %v449 = vunpack.c.l.b16 %v401
        %v450 = vunpack.c.l.b16 %v411
        %v451 = vpack.c.b16 %v448, %v447
        %v452 = vpack.c.b16 %v450, %v449
        %v455 = vunpack.c.l.b16 %v426
        %v456 = vunpack.c.l.b16 %v429
        %v457 = vunpack.c.l.b16 %v433
        %v458 = vunpack.c.l.b16 %v436
        %v459 = vpack.c.b16 %v456, %v455
        %v460 = vpack.c.b16 %v458, %v457
        %v463 = vld [vmem:[#allocation6] sm:$0xf]
        %v464 = vld [vmem:[#allocation6 + $0x4] sm:$0xf]
        %v465 = vld [vmem:[#allocation6 + $0x8] sm:$0xf]
        %v466 = vld [vmem:[#allocation6 + $0xc] sm:$0xf]
        %v467 = vld [vmem:[#allocation6 + $0x10] sm:$0xf]
        %v468 = vld [vmem:[#allocation6 + $0x14] sm:$0xf]
        %v469 = vld [vmem:[#allocation6 + $0x18] sm:$0xf]
        %v470 = vld [vmem:[#allocation6 + $0x1c] sm:$0xf]
        %v471 = vld [vmem:[#allocation6 + $0x20] sm:$0xf]
        %v472 = vld [vmem:[#allocation6 + $0x24] sm:$0xf]
        %v473 = vld [vmem:[#allocation6 + $0x28] sm:$0xf]
        %v474 = vld [vmem:[#allocation6 + $0x2c] sm:$0xf]
        %v475 = vld [vmem:[#allocation6 + $0x30] sm:$0xf]
        %v476 = vld [vmem:[#allocation6 + $0x34] sm:$0xf]
        %v477 = vld [vmem:[#allocation6 + $0x38] sm:$0xf]
        %v478 = vld [vmem:[#allocation6 + $0x3c] sm:$0xf]
        %v479 = vld [vmem:[#allocation6 + $0x40] sm:$0xf]
        %v480 = vld [vmem:[#allocation6 + $0x44] sm:$0xf]
        %v481 = vld [vmem:[#allocation6 + $0x48] sm:$0xf]
        %v482 = vld [vmem:[#allocation6 + $0x4c] sm:$0xf]
        %v483 = vld [vmem:[#allocation6 + $0x50] sm:$0xf]
        %v484 = vld [vmem:[#allocation6 + $0x54] sm:$0xf]
        %v485 = vld [vmem:[#allocation6 + $0x58] sm:$0xf]
        %v486 = vld [vmem:[#allocation6 + $0x5c] sm:$0xf]
        %v487 = vld [vmem:[#allocation6 + $0x60] sm:$0xf]
        %v488 = vld [vmem:[#allocation6 + $0x64] sm:$0xf]
        %v489 = vld [vmem:[#allocation6 + $0x68] sm:$0xf]
        %v490 = vld [vmem:[#allocation6 + $0x6c] sm:$0xf]
        %v491 = vld [vmem:[#allocation6 + $0x70] sm:$0xf]
        %v492 = vld [vmem:[#allocation6 + $0x74] sm:$0xf]
        %v493 = vld [vmem:[#allocation6 + $0x78] sm:$0xf]
        %v494 = vld [vmem:[#allocation6 + $0x7c] sm:$0xf]
        %v495 = vld [vmem:[#allocation6 + $0x80] sm:$0xf]
        %v496 = vld [vmem:[#allocation6 + $0x84] sm:$0xf]
        %v497 = vld [vmem:[#allocation6 + $0x88] sm:$0xf]
        %v498 = vld [vmem:[#allocation6 + $0x8c] sm:$0xf]
        %v499 = vld [vmem:[#allocation6 + $0x90] sm:$0xf]
        %v500 = vld [vmem:[#allocation6 + $0x94] sm:$0xf]
        %v501 = vld [vmem:[#allocation6 + $0x98] sm:$0xf]
        %v502 = vld [vmem:[#allocation6 + $0x9c] sm:$0xf]
        %v503 = vld [vmem:[#allocation6 + $0xa0] sm:$0xf]
        %v504 = vld [vmem:[#allocation6 + $0xa4] sm:$0xf]
        %v505 = vld [vmem:[#allocation6 + $0xa8] sm:$0xf]
        %v506 = vld [vmem:[#allocation6 + $0xac] sm:$0xf]
        %v507 = vld [vmem:[#allocation6 + $0xb0] sm:$0xf]
        %v508 = vld [vmem:[#allocation6 + $0xb4] sm:$0xf]
        %v509 = vld [vmem:[#allocation6 + $0xb8] sm:$0xf]
        %v510 = vld [vmem:[#allocation6 + $0xbc] sm:$0xf]
        %v559 = vunpack.c.l.b16 %v463
        %v560 = vunpack.c.l.b16 %v464
        %v561 = vunpack.c.l.b16 %v465
        %v562 = vunpack.c.l.b16 %v466
        %v563 = vunpack.c.l.b16 %v467
        %v564 = vunpack.c.l.b16 %v468
        %v565 = vunpack.c.l.b16 %v469
        %v566 = vunpack.c.l.b16 %v470
        %v567 = vunpack.c.l.b16 %v471
        %v568 = vunpack.c.l.b16 %v472
        %v569 = vunpack.c.l.b16 %v473
        %v570 = vunpack.c.l.b16 %v474
        %v571 = vunpack.c.l.b16 %v475
        %v572 = vunpack.c.l.b16 %v476
        %v573 = vunpack.c.l.b16 %v477
        %v574 = vunpack.c.l.b16 %v478
        %v575 = vunpack.c.l.b16 %v479
        %v576 = vunpack.c.l.b16 %v480
        %v577 = vunpack.c.l.b16 %v481
        %v578 = vunpack.c.l.b16 %v482
        %v579 = vunpack.c.l.b16 %v483
        %v580 = vunpack.c.l.b16 %v484
        %v581 = vunpack.c.l.b16 %v485
        %v582 = vunpack.c.l.b16 %v486
        %v583 = vunpack.c.l.b16 %v487
        %v584 = vunpack.c.l.b16 %v488
        %v585 = vunpack.c.l.b16 %v489
        %v586 = vunpack.c.l.b16 %v490
        %v587 = vunpack.c.l.b16 %v491
        %v588 = vunpack.c.l.b16 %v492
        %v589 = vunpack.c.l.b16 %v493
        %v590 = vunpack.c.l.b16 %v494
        %v591 = vunpack.c.l.b16 %v495
        %v592 = vunpack.c.l.b16 %v496
        %v593 = vunpack.c.l.b16 %v497
        %v594 = vunpack.c.l.b16 %v498
        %v595 = vunpack.c.l.b16 %v499
        %v596 = vunpack.c.l.b16 %v500
        %v597 = vunpack.c.l.b16 %v501
        %v598 = vunpack.c.l.b16 %v502
        %v599 = vunpack.c.l.b16 %v503
        %v600 = vunpack.c.l.b16 %v504
        %v601 = vunpack.c.l.b16 %v505
        %v602 = vunpack.c.l.b16 %v506
        %v603 = vunpack.c.l.b16 %v507
        %v604 = vunpack.c.l.b16 %v508
        %v605 = vunpack.c.l.b16 %v509
        %v606 = vunpack.c.l.b16 %v510
        %v607 = vpack.c.b16 %v560, %v559
        %v608 = vpack.c.b16 %v562, %v561
        %v609 = vpack.c.b16 %v564, %v563
        %v610 = vpack.c.b16 %v566, %v565
        %v611 = vpack.c.b16 %v568, %v567
        %v612 = vpack.c.b16 %v570, %v569
        %v613 = vpack.c.b16 %v572, %v571
        %v614 = vpack.c.b16 %v574, %v573
        %v615 = vpack.c.b16 %v576, %v575
        %v616 = vpack.c.b16 %v578, %v577
        %v617 = vpack.c.b16 %v580, %v579
        %v618 = vpack.c.b16 %v582, %v581
        %v619 = vpack.c.b16 %v584, %v583
        %v620 = vpack.c.b16 %v586, %v585
        %v621 = vpack.c.b16 %v588, %v587
        %v622 = vpack.c.b16 %v590, %v589
        %v623 = vpack.c.b16 %v592, %v591
        %v624 = vpack.c.b16 %v594, %v593
        %v625 = vpack.c.b16 %v596, %v595
        %v626 = vpack.c.b16 %v598, %v597
        %v627 = vpack.c.b16 %v600, %v599
        %v628 = vpack.c.b16 %v602, %v601
        %v629 = vpack.c.b16 %v604, %v603
        %v630 = vpack.c.b16 %v606, %v605
        %655 = vmatprep.subr.bf16.mxu0 0
        %656 = vmatpush1.bf16.msra.mxu0 %v607
        %657 = vmatprep.subr.bf16.mxu0 0
        %658 = vmatpush1.bf16.msra.mxu0 %v608
        %659 = vmatprep.subr.bf16.mxu0 0
        %660 = vmatpush1.bf16.msra.mxu0 %v609
        %661 = vmatprep.subr.bf16.mxu0 0
        %662 = vmatpush1.bf16.msra.mxu0 %v610
        %663 = vmatprep.subr.bf16.mxu0 0
        %664 = vmatpush1.bf16.msra.mxu0 %v611
        %665 = vmatprep.subr.bf16.mxu0 0
        %666 = vmatpush1.bf16.msra.mxu0 %v612
        %667 = vmatprep.subr.bf16.mxu0 0
        %668 = vmatpush1.bf16.msra.mxu0 %v613
        %669 = vmatprep.subr.bf16.mxu0 0
        %670 = vmatpush1.bf16.msra.mxu0 %v614
        %671 = vmatprep.subr.bf16.mxu0 0
        %672 = vmatpush1.bf16.msra.mxu0 %v615
        %673 = vmatprep.subr.bf16.mxu0 0
        %674 = vmatpush1.bf16.msra.mxu0 %v616
        %675 = vmatprep.subr.bf16.mxu0 0
        %676 = vmatpush1.bf16.msra.mxu0 %v617
        %677 = vmatprep.subr.bf16.mxu0 0
        %678 = vmatpush1.bf16.msra.mxu0 %v618
        %679 = vmatprep.subr.bf16.mxu0 0
        %680 = vmatpush1.bf16.msra.mxu0 %v619
        %681 = vmatprep.subr.bf16.mxu0 0
        %682 = vmatpush1.bf16.msra.mxu0 %v620
        %683 = vmatprep.subr.bf16.mxu0 0
        %684 = vmatpush1.bf16.msra.mxu0 %v621
        %685 = vmatprep.subr.bf16.mxu0 0
        %686 = vmatpush1.bf16.msra.mxu0 %v622
        %687 = vmatprep.mubr.bf16.mxu0 %v451
        %688 = vmatmul.mubr.bf16.gmra.mrb[0].mxu0 %v443
        %v689 = vpop.f32.mrb[0].mxu0
        %v690 = vadd.f32 0.0, %v689
        %v691 = vpop.f32.mrb[0].mxu0
        %v692 = vpop.f32.mrb[0].mxu0
        %v693 = vadd.f32 0.0, %v692
        %v694 = vpop.f32.mrb[0].mxu0
        %695 = vmatprep.mubr.bf16.mxu0 %v452
        %696 = vmatmul.mubr.bf16.gmra.mrb[0].mxu0 %v444
        %v697 = vpop.f32.mrb[0].mxu0
        %v698 = vadd.f32 0.0, %v697
        %v699 = vpop.f32.mrb[0].mxu0
        %v700 = vpop.f32.mrb[0].mxu0
        %v701 = vadd.f32 0.0, %v700
        %v702 = vpop.f32.mrb[0].mxu0
        %703 = vdwg.mxu0
        %704 = vmatprep.subr.bf16.mxu0 0
        %705 = vmatpush1.bf16.msra.mxu0 %v623
        %706 = vmatprep.subr.bf16.mxu0 0
        %707 = vmatpush1.bf16.msra.mxu0 %v624
        %708 = vmatprep.subr.bf16.mxu0 0
        %709 = vmatpush1.bf16.msra.mxu0 %v625
        %710 = vmatprep.subr.bf16.mxu0 0
        %711 = vmatpush1.bf16.msra.mxu0 %v626
        %712 = vmatprep.subr.bf16.mxu0 0
        %713 = vmatpush1.bf16.msra.mxu0 %v627
        %714 = vmatprep.subr.bf16.mxu0 0
        %715 = vmatpush1.bf16.msra.mxu0 %v628
        %716 = vmatprep.subr.bf16.mxu0 0
        %717 = vmatpush1.bf16.msra.mxu0 %v629
        %718 = vmatprep.subr.bf16.mxu0 0
        %719 = vmatpush1.bf16.msra.mxu0 %v630
        %720 = vmatprep.subr.bf16.mxu0 0
        %721 = vmatpush1.bf16.msra.mxu0 0
        %722 = vmatprep.subr.bf16.mxu0 0
        %723 = vmatpush1.bf16.msra.mxu0 0
        %724 = vmatprep.subr.bf16.mxu0 0
        %725 = vmatpush1.bf16.msra.mxu0 0
        %726 = vmatprep.subr.bf16.mxu0 0
        %727 = vmatpush1.bf16.msra.mxu0 0
        %728 = vmatprep.subr.bf16.mxu0 0
        %729 = vmatpush1.bf16.msra.mxu0 0
        %730 = vmatprep.subr.bf16.mxu0 0
        %731 = vmatpush1.bf16.msra.mxu0 0
        %732 = vmatprep.subr.bf16.mxu0 0
        %733 = vmatpush1.bf16.msra.mxu0 0
        %734 = vmatprep.subr.bf16.mxu0 0
        %735 = vmatpush1.bf16.msra.mxu0 0
        %736 = vmatprep.mubr.bf16.mxu0 0
        %737 = vmatmul.mubr.bf16.gmra.mrb[0].mxu0 %v459
        %v738 = vpop.f32.mrb[0].mxu0
        %v739 = vadd.f32 %v690, %v738
        %v740 = vpop.f32.mrb[0].mxu0
        %v741 = vpop.f32.mrb[0].mxu0
        %v742 = vadd.f32 %v693, %v741
        %v743 = vpop.f32.mrb[0].mxu0
        %744 = vmatprep.mubr.bf16.mxu0 0
        %745 = vmatmul.mubr.bf16.gmra.mrb[0].mxu0 %v460
        %v746 = vpop.f32.mrb[0].mxu0
        %v747 = vadd.f32 %v698, %v746
        %v748 = vpop.f32.mrb[0].mxu0
        %v749 = vpop.f32.mrb[0].mxu0
        %v750 = vadd.f32 %v701, %v749
        %v751 = vpop.f32.mrb[0].mxu0
        %752 = vdwg.mxu0
        %v753 = vld [vmem:[%s2] sm:$0x1]
        %v755 = vlaneseq
        %v756 = vshrl.u32 %v755, 7
        %v757 = vsub.s32 0, %v756
        %v758 = vrot.slane %v753, %v757
        %v760 = vadd.f32 %v739, %v758
        %v761 = vadd.f32 %v742, %v758
        %v762 = vadd.f32 %v747, %v758
        %v763 = vadd.f32 %v750, %v758
        %v764 = vmax.f32 %v760, 0.0
        %v765 = vmax.f32 %v761, 0.0
        %v766 = vmax.f32 %v762, 0.0
        %v767 = vmax.f32 %v763, 0.0
        %v768 = vpack.c.bf16 %v765, %v764
        %v769 = vpack.c.bf16 %v767, %v766
        %v772 = vunpack.c.l.b16 %v768
        %v773 = vunpack.c.h.b16 %v768
        %v774 = vunpack.c.l.b16 %v769
        %v775 = vunpack.c.h.b16 %v769
        %v776 = vpack.c.b16 %v772, %v772
        %v777 = vpack.c.b16 %v773, %v773
        %v778 = vpack.c.b16 %v774, %v774
        %v779 = vpack.c.b16 %v775, %v775
        %v781 = vshrl.u32 %v776, 16
        %v783 = vrot.slane %v781, 7
        %v784 = vshll.u32 %v776, 16
        %v786 = vor.u32 %v783, %v784
        %v787 = vrot.slane %v783, 4
        %v789 = vshrl.u32 %v777, 16
        %v791 = vrot.slane %v789, 7
        %v792 = vshll.u32 %v777, 16
        %v794 = vor.u32 %v791, %v792
        %v795 = vsel %vm298, %v787, %v794
        %v796 = vrot.slane %v791, 4
        %v798 = vshrl.u32 %v778, 16
        %v800 = vrot.slane %v798, 7
        %v801 = vshll.u32 %v778, 16
        %v803 = vor.u32 %v800, %v801
        %v804 = vrot.slane %v800, 4
        %v806 = vshrl.u32 %v779, 16
        %v808 = vrot.slane %v806, 7
        %v809 = vshll.u32 %v779, 16
        %v811 = vor.u32 %v808, %v809
        %v812 = vsel %vm298, %v804, %v811
        %v813 = vrot.slane %v808, 4
        %v820 = vsel %vm340, %v786, %v355
        %821 = vst [vmem:[#allocation2] sm:$0xf] %v820
        %822 = vst [vmem:[#allocation2 + $0x4] sm:$0xf] %v795
        %v823 = vld [vmem:[#allocation2 + $0x8] sm:$0x1]
        %v824 = vsel %vm278, %v796, %v823
        %825 = vst [vmem:[#allocation2 + $0x8] sm:$0x1] %v824
        %v826 = vld [vmem:[#allocation2 + $0xc] sm:$0xf]
        %v827 = vsel %vm340, %v803, %v826
        %828 = vst [vmem:[#allocation2 + $0xc] sm:$0xf] %v827
        %829 = vst [vmem:[#allocation2 + $0x10] sm:$0xf] %v812
        %v830 = vld [vmem:[#allocation2 + $0x14] sm:$0x1]
        %v831 = vsel %vm278, %v813, %v830
        %832 = vst [vmem:[#allocation2 + $0x14] sm:$0x1] %v831
        %v833 = vld [vmem:[#allocation2] sm:$0xf]
        %v834 = vld [vmem:[#allocation2 + $0x4] sm:$0xf]
        %v835 = vld [vmem:[#allocation2 + $0xc] sm:$0xf]
        %v836 = vld [vmem:[#allocation2 + $0x10] sm:$0xf]
        %v837 = vld [vmem:[#allocation2 + $0x8] sm:$0x1]
        %v838 = vld [vmem:[#allocation2 + $0x14] sm:$0x1]
        %v840 = vshrl.u32 %v833, 16
        %v842 = vrot.slane %v840, 4
        %v843 = vshll.u32 %v833, 16
        %v845 = vrot.slane %v843, 5
        %v846 = vor.u32 %v842, %v845
        %v847 = vrot.slane %v846, 4
        %v849 = vshll.u32 %v834, 16
        %v851 = vrot.slane %v849, 5
        %v852 = vsel %vm363, %v847, %v851
        %v853 = vshrl.u32 %v834, 16
        %v855 = vrot.slane %v853, 4
        %v856 = vor.u32 %v855, %v851
        %v857 = vrot.slane %v856, 4
        %v859 = vshll.u32 %v837, 16
        %v861 = vrot.slane %v859, 5
        %v862 = vsel %vm363, %v857, %v861
        %v864 = vshrl.u32 %v835, 16
        %v866 = vrot.slane %v864, 4
        %v867 = vshll.u32 %v835, 16
        %v869 = vrot.slane %v867, 5
        %v870 = vor.u32 %v866, %v869
        %v871 = vrot.slane %v870, 4
        %v873 = vshll.u32 %v836, 16
        %v875 = vrot.slane %v873, 5
        %v876 = vsel %vm363, %v871, %v875
        %v877 = vshrl.u32 %v836, 16
        %v879 = vrot.slane %v877, 4
        %v880 = vor.u32 %v879, %v875
        %v881 = vrot.slane %v880, 4
        %v883 = vshll.u32 %v838, 16
        %v885 = vrot.slane %v883, 5
        %v886 = vsel %vm363, %v881, %v885
        %v887 = vld [vmem:[#allocation2] sm:$0xe]
        %v888 = vld [vmem:[#allocation2 + $0xc] sm:$0xe]
        %v895 = vrot.slane %v887, 5
        %v896 = vrot.slane %v895, 4
        %v897 = vrot.slane %v834, 5
        %v898 = vsel %vm422, %v896, %v897
        %v899 = vrot.slane %v897, 4
        %v900 = vrot.slane %v837, 5
        %v901 = vsel %vm422, %v899, %v900
        %v902 = vrot.slane %v888, 5
        %v903 = vrot.slane %v902, 4
        %v904 = vrot.slane %v836, 5
        %v905 = vsel %vm422, %v903, %v904
        %v906 = vrot.slane %v904, 4
        %v907 = vrot.slane %v838, 5
        %v908 = vsel %vm422, %v906, %v907
        %v911 = vunpack.c.l.b16 %v833
        %v912 = vunpack.c.l.b16 %v834
        %v913 = vunpack.c.l.b16 %v835
        %v914 = vunpack.c.l.b16 %v836
        %v915 = vpack.c.b16 %v912, %v911
        %v916 = vpack.c.b16 %v914, %v913
        %v919 = vunpack.c.l.b16 %v852
        %v920 = vunpack.c.l.b16 %v862
        %v921 = vunpack.c.l.b16 %v876
        %v922 = vunpack.c.l.b16 %v886
        %v923 = vpack.c.b16 %v920, %v919
        %v924 = vpack.c.b16 %v922, %v921
        %v927 = vunpack.c.l.b16 %v898
        %v928 = vunpack.c.l.b16 %v901
        %v929 = vunpack.c.l.b16 %v905
        %v930 = vunpack.c.l.b16 %v908
        %v931 = vpack.c.b16 %v928, %v927
        %v932 = vpack.c.b16 %v930, %v929
        %v935 = vld [vmem:[#allocation8] sm:$0xf]
        %v936 = vld [vmem:[#allocation8 + $0x4] sm:$0xf]
        %v937 = vld [vmem:[#allocation8 + $0x8] sm:$0xf]
        %v938 = vld [vmem:[#allocation8 + $0xc] sm:$0xf]
        %v939 = vld [vmem:[#allocation8 + $0x10] sm:$0xf]
        %v940 = vld [vmem:[#allocation8 + $0x14] sm:$0xf]
        %v941 = vld [vmem:[#allocation8 + $0x18] sm:$0xf]
        %v942 = vld [vmem:[#allocation8 + $0x1c] sm:$0xf]
        %v943 = vld [vmem:[#allocation8 + $0x20] sm:$0xf]
        %v944 = vld [vmem:[#allocation8 + $0x24] sm:$0xf]
        %v945 = vld [vmem:[#allocation8 + $0x28] sm:$0xf]
        %v946 = vld [vmem:[#allocation8 + $0x2c] sm:$0xf]
        %v947 = vld [vmem:[#allocation8 + $0x30] sm:$0xf]
        %v948 = vld [vmem:[#allocation8 + $0x34] sm:$0xf]
        %v949 = vld [vmem:[#allocation8 + $0x38] sm:$0xf]
        %v950 = vld [vmem:[#allocation8 + $0x3c] sm:$0xf]
        %v951 = vld [vmem:[#allocation8 + $0x40] sm:$0xf]
        %v952 = vld [vmem:[#allocation8 + $0x44] sm:$0xf]
        %v953 = vld [vmem:[#allocation8 + $0x48] sm:$0xf]
        %v954 = vld [vmem:[#allocation8 + $0x4c] sm:$0xf]
        %v955 = vld [vmem:[#allocation8 + $0x50] sm:$0xf]
        %v956 = vld [vmem:[#allocation8 + $0x54] sm:$0xf]
        %v957 = vld [vmem:[#allocation8 + $0x58] sm:$0xf]
        %v958 = vld [vmem:[#allocation8 + $0x5c] sm:$0xf]
        %v959 = vld [vmem:[#allocation8 + $0x60] sm:$0xf]
        %v960 = vld [vmem:[#allocation8 + $0x64] sm:$0xf]
        %v961 = vld [vmem:[#allocation8 + $0x68] sm:$0xf]
        %v962 = vld [vmem:[#allocation8 + $0x6c] sm:$0xf]
        %v963 = vld [vmem:[#allocation8 + $0x70] sm:$0xf]
        %v964 = vld [vmem:[#allocation8 + $0x74] sm:$0xf]
        %v965 = vld [vmem:[#allocation8 + $0x78] sm:$0xf]
        %v966 = vld [vmem:[#allocation8 + $0x7c] sm:$0xf]
        %v967 = vld [vmem:[#allocation8 + $0x80] sm:$0xf]
        %v968 = vld [vmem:[#allocation8 + $0x84] sm:$0xf]
        %v969 = vld [vmem:[#allocation8 + $0x88] sm:$0xf]
        %v970 = vld [vmem:[#allocation8 + $0x8c] sm:$0xf]
        %v971 = vld [vmem:[#allocation8 + $0x90] sm:$0xf]
        %v972 = vld [vmem:[#allocation8 + $0x94] sm:$0xf]
        %v973 = vld [vmem:[#allocation8 + $0x98] sm:$0xf]
        %v974 = vld [vmem:[#allocation8 + $0x9c] sm:$0xf]
        %v975 = vld [vmem:[#allocation8 + $0xa0] sm:$0xf]
        %v976 = vld [vmem:[#allocation8 + $0xa4] sm:$0xf]
        %v977 = vld [vmem:[#allocation8 + $0xa8] sm:$0xf]
        %v978 = vld [vmem:[#allocation8 + $0xac] sm:$0xf]
        %v979 = vld [vmem:[#allocation8 + $0xb0] sm:$0xf]
        %v980 = vld [vmem:[#allocation8 + $0xb4] sm:$0xf]
        %v981 = vld [vmem:[#allocation8 + $0xb8] sm:$0xf]
        %v982 = vld [vmem:[#allocation8 + $0xbc] sm:$0xf]
        %v1031 = vunpack.c.l.b16 %v935
        %v1032 = vunpack.c.l.b16 %v936
        %v1033 = vunpack.c.l.b16 %v937
        %v1034 = vunpack.c.l.b16 %v938
        %v1035 = vunpack.c.l.b16 %v939
        %v1036 = vunpack.c.l.b16 %v940
        %v1037 = vunpack.c.l.b16 %v941
        %v1038 = vunpack.c.l.b16 %v942
        %v1039 = vunpack.c.l.b16 %v943
        %v1040 = vunpack.c.l.b16 %v944
        %v1041 = vunpack.c.l.b16 %v945
        %v1042 = vunpack.c.l.b16 %v946
        %v1043 = vunpack.c.l.b16 %v947
        %v1044 = vunpack.c.l.b16 %v948
        %v1045 = vunpack.c.l.b16 %v949
        %v1046 = vunpack.c.l.b16 %v950
        %v1047 = vunpack.c.l.b16 %v951
        %v1048 = vunpack.c.l.b16 %v952
        %v1049 = vunpack.c.l.b16 %v953
        %v1050 = vunpack.c.l.b16 %v954
        %v1051 = vunpack.c.l.b16 %v955
        %v1052 = vunpack.c.l.b16 %v956
        %v1053 = vunpack.c.l.b16 %v957
        %v1054 = vunpack.c.l.b16 %v958
        %v1055 = vunpack.c.l.b16 %v959
        %v1056 = vunpack.c.l.b16 %v960
        %v1057 = vunpack.c.l.b16 %v961
        %v1058 = vunpack.c.l.b16 %v962
        %v1059 = vunpack.c.l.b16 %v963
        %v1060 = vunpack.c.l.b16 %v964
        %v1061 = vunpack.c.l.b16 %v965
        %v1062 = vunpack.c.l.b16 %v966
        %v1063 = vunpack.c.l.b16 %v967
        %v1064 = vunpack.c.l.b16 %v968
        %v1065 = vunpack.c.l.b16 %v969
        %v1066 = vunpack.c.l.b16 %v970
        %v1067 = vunpack.c.l.b16 %v971
        %v1068 = vunpack.c.l.b16 %v972
        %v1069 = vunpack.c.l.b16 %v973
        %v1070 = vunpack.c.l.b16 %v974
        %v1071 = vunpack.c.l.b16 %v975
        %v1072 = vunpack.c.l.b16 %v976
        %v1073 = vunpack.c.l.b16 %v977
        %v1074 = vunpack.c.l.b16 %v978
        %v1075 = vunpack.c.l.b16 %v979
        %v1076 = vunpack.c.l.b16 %v980
        %v1077 = vunpack.c.l.b16 %v981
        %v1078 = vunpack.c.l.b16 %v982
        %v1079 = vpack.c.b16 %v1032, %v1031
        %v1080 = vpack.c.b16 %v1034, %v1033
        %v1081 = vpack.c.b16 %v1036, %v1035
        %v1082 = vpack.c.b16 %v1038, %v1037
        %v1083 = vpack.c.b16 %v1040, %v1039
        %v1084 = vpack.c.b16 %v1042, %v1041
        %v1085 = vpack.c.b16 %v1044, %v1043
        %v1086 = vpack.c.b16 %v1046, %v1045
        %v1087 = vpack.c.b16 %v1048, %v1047
        %v1088 = vpack.c.b16 %v1050, %v1049
        %v1089 = vpack.c.b16 %v1052, %v1051
        %v1090 = vpack.c.b16 %v1054, %v1053
        %v1091 = vpack.c.b16 %v1056, %v1055
        %v1092 = vpack.c.b16 %v1058, %v1057
        %v1093 = vpack.c.b16 %v1060, %v1059
        %v1094 = vpack.c.b16 %v1062, %v1061
        %v1095 = vpack.c.b16 %v1064, %v1063
        %v1096 = vpack.c.b16 %v1066, %v1065
        %v1097 = vpack.c.b16 %v1068, %v1067
        %v1098 = vpack.c.b16 %v1070, %v1069
        %v1099 = vpack.c.b16 %v1072, %v1071
        %v1100 = vpack.c.b16 %v1074, %v1073
        %v1101 = vpack.c.b16 %v1076, %v1075
        %v1102 = vpack.c.b16 %v1078, %v1077
        %1127 = vmatprep.subr.bf16.mxu0 0
        %1128 = vmatpush1.bf16.msra.mxu0 %v1079
        %1129 = vmatprep.subr.bf16.mxu0 0
        %1130 = vmatpush1.bf16.msra.mxu0 %v1080
        %1131 = vmatprep.subr.bf16.mxu0 0
        %1132 = vmatpush1.bf16.msra.mxu0 %v1081
        %1133 = vmatprep.subr.bf16.mxu0 0
        %1134 = vmatpush1.bf16.msra.mxu0 %v1082
        %1135 = vmatprep.subr.bf16.mxu0 0
        %1136 = vmatpush1.bf16.msra.mxu0 %v1083
        %1137 = vmatprep.subr.bf16.mxu0 0
        %1138 = vmatpush1.bf16.msra.mxu0 %v1084
        %1139 = vmatprep.subr.bf16.mxu0 0
        %1140 = vmatpush1.bf16.msra.mxu0 %v1085
        %1141 = vmatprep.subr.bf16.mxu0 0
        %1142 = vmatpush1.bf16.msra.mxu0 %v1086
        %1143 = vmatprep.subr.bf16.mxu0 0
        %1144 = vmatpush1.bf16.msra.mxu0 %v1087
        %1145 = vmatprep.subr.bf16.mxu0 0
        %1146 = vmatpush1.bf16.msra.mxu0 %v1088
        %1147 = vmatprep.subr.bf16.mxu0 0
        %1148 = vmatpush1.bf16.msra.mxu0 %v1089
        %1149 = vmatprep.subr.bf16.mxu0 0
        %1150 = vmatpush1.bf16.msra.mxu0 %v1090
        %1151 = vmatprep.subr.bf16.mxu0 0
        %1152 = vmatpush1.bf16.msra.mxu0 %v1091
        %1153 = vmatprep.subr.bf16.mxu0 0
        %1154 = vmatpush1.bf16.msra.mxu0 %v1092
        %1155 = vmatprep.subr.bf16.mxu0 0
        %1156 = vmatpush1.bf16.msra.mxu0 %v1093
        %1157 = vmatprep.subr.bf16.mxu0 0
        %1158 = vmatpush1.bf16.msra.mxu0 %v1094
        %1159 = vmatprep.mubr.bf16.mxu0 %v923
        %1160 = vmatmul.mubr.bf16.gmra.mrb[0].mxu0 %v915
        %v1161 = vpop.f32.mrb[0].mxu0
        %v1162 = vadd.f32 0.0, %v1161
        %v1163 = vpop.f32.mrb[0].mxu0
        %v1164 = vpop.f32.mrb[0].mxu0
        %v1165 = vadd.f32 0.0, %v1164
        %v1166 = vpop.f32.mrb[0].mxu0
        %1167 = vmatprep.mubr.bf16.mxu0 %v924
        %1168 = vmatmul.mubr.bf16.gmra.mrb[0].mxu0 %v916
        %v1169 = vpop.f32.mrb[0].mxu0
        %v1170 = vadd.f32 0.0, %v1169
        %v1171 = vpop.f32.mrb[0].mxu0
        %v1172 = vpop.f32.mrb[0].mxu0
        %v1173 = vadd.f32 0.0, %v1172
        %v1174 = vpop.f32.mrb[0].mxu0
        %1175 = vdwg.mxu0
        %1176 = vmatprep.subr.bf16.mxu0 0
        %1177 = vmatpush1.bf16.msra.mxu0 %v1095
        %1178 = vmatprep.subr.bf16.mxu0 0
        %1179 = vmatpush1.bf16.msra.mxu0 %v1096
        %1180 = vmatprep.subr.bf16.mxu0 0
        %1181 = vmatpush1.bf16.msra.mxu0 %v1097
        %1182 = vmatprep.subr.bf16.mxu0 0
        %1183 = vmatpush1.bf16.msra.mxu0 %v1098
        %1184 = vmatprep.subr.bf16.mxu0 0
        %1185 = vmatpush1.bf16.msra.mxu0 %v1099
        %1186 = vmatprep.subr.bf16.mxu0 0
        %1187 = vmatpush1.bf16.msra.mxu0 %v1100
        %1188 = vmatprep.subr.bf16.mxu0 0
        %1189 = vmatpush1.bf16.msra.mxu0 %v1101
        %1190 = vmatprep.subr.bf16.mxu0 0
        %1191 = vmatpush1.bf16.msra.mxu0 %v1102
        %1192 = vmatprep.subr.bf16.mxu0 0
        %1193 = vmatpush1.bf16.msra.mxu0 0
        %1194 = vmatprep.subr.bf16.mxu0 0
        %1195 = vmatpush1.bf16.msra.mxu0 0
        %1196 = vmatprep.subr.bf16.mxu0 0
        %1197 = vmatpush1.bf16.msra.mxu0 0
        %1198 = vmatprep.subr.bf16.mxu0 0
        %1199 = vmatpush1.bf16.msra.mxu0 0
        %1200 = vmatprep.subr.bf16.mxu0 0
        %1201 = vmatpush1.bf16.msra.mxu0 0
        %1202 = vmatprep.subr.bf16.mxu0 0
        %1203 = vmatpush1.bf16.msra.mxu0 0
        %1204 = vmatprep.subr.bf16.mxu0 0
        %1205 = vmatpush1.bf16.msra.mxu0 0
        %1206 = vmatprep.subr.bf16.mxu0 0
        %1207 = vmatpush1.bf16.msra.mxu0 0
        %1208 = vmatprep.mubr.bf16.mxu0 0
        %1209 = vmatmul.mubr.bf16.gmra.mrb[0].mxu0 %v931
        %v1210 = vpop.f32.mrb[0].mxu0
        %v1211 = vadd.f32 %v1162, %v1210
        %v1212 = vpop.f32.mrb[0].mxu0
        %v1213 = vpop.f32.mrb[0].mxu0
        %v1214 = vadd.f32 %v1165, %v1213
        %v1215 = vpop.f32.mrb[0].mxu0
        %1216 = vmatprep.mubr.bf16.mxu0 0
        %1217 = vmatmul.mubr.bf16.gmra.mrb[0].mxu0 %v932
        %v1218 = vpop.f32.mrb[0].mxu0
        %v1219 = vadd.f32 %v1170, %v1218
        %v1220 = vpop.f32.mrb[0].mxu0
        %v1221 = vpop.f32.mrb[0].mxu0
        %v1222 = vadd.f32 %v1173, %v1221
        %v1223 = vpop.f32.mrb[0].mxu0
        %1224 = vdwg.mxu0
        %v1225 = vld [vmem:[%s4] sm:$0x1]
        %v1227 = vlaneseq
        %v1228 = vshrl.u32 %v1227, 7
        %v1229 = vsub.s32 0, %v1228
        %v1230 = vrot.slane %v1225, %v1229
        %v1232 = vadd.f32 %v1211, %v1230
        %v1233 = vadd.f32 %v1214, %v1230
        %v1234 = vadd.f32 %v1219, %v1230
        %v1235 = vadd.f32 %v1222, %v1230
        %v1236 = vunpack.c.l.bf16 %v293
        %v1237 = vunpack.c.l.bf16 %v294
        %v1238 = vunpack.c.l.bf16 %v295
        %v1239 = vunpack.c.l.bf16 %v296
        %v1240 = vadd.f32 %v1232, %v1236
        %v1241 = vadd.f32 %v1233, %v1237
        %v1242 = vadd.f32 %v1234, %v1238
        %v1243 = vadd.f32 %v1235, %v1239
        %v1244 = vmax.f32 %v1240, 0.0
        %v1245 = vmax.f32 %v1241, 0.0
        %v1246 = vmax.f32 %v1242, 0.0
        %v1247 = vmax.f32 %v1243, 0.0
        %v1248 = vpack.c.bf16 %v1245, %v1244
        %v1249 = vpack.c.bf16 %v1247, %v1246
        %v1252 = vunpack.c.l.b16 %v1248
        %v1253 = vunpack.c.h.b16 %v1248
        %v1254 = vunpack.c.l.b16 %v1249
        %v1255 = vunpack.c.h.b16 %v1249
        %v1256 = vpack.c.b16 %v1252, %v1252
        %v1257 = vpack.c.b16 %v1253, %v1253
        %v1258 = vpack.c.b16 %v1254, %v1254
        %v1259 = vpack.c.b16 %v1255, %v1255
        %1264 = vst [vmem:[%s272] sm:$0xf] %v1256
        %1265 = vst [vmem:[%s272 + $0x4] sm:$0xf] %v1257
        %1266 = vst [vmem:[%s272 + $0x8] sm:$0xf] %v1258
        %1267 = vst [vmem:[%s272 + $0xc] sm:$0xf] %v1259
        %s1268 = sand.u32 %s141, 1
        %s1269 = scalar_lea.sflag [#allocation5], %s1268
        %s1270 = sand.u32 %s141, 1
        %s1271 = smul.addr %s1270, 16
        %s1272 = scalar_lea.vmem [#allocation9], %s1271
        // Predicated region
        $region53: #{tpu_custom_call.1} parent=39 // pred_check
          %p1273 = pneg %p151
        $region54: #{tpu_custom_call.1} parent=39 // pred_check_branch
          %1275 = sbr.rel (%p1273) target = $region56
        $region55: #{tpu_custom_call.1} parent=39 // pred_region
          %s1276 = smul.u32 2, %s23
          %s1278 = ssub.s32 256, 256
          %1279 = vsyncadd %s1269, %s1278
          %s1280 = smul.addr %s1276, 2
          %s1281 = smul.addr %s1280, 64
          %s1282 = scalar_lea.hbm %s5, %s1281
          %s1283 = sshll.u32 %s1272, 4
          %s1284 = int_to_ptr.vmem [resolvable:$true] %s1283
          %1289 = dma.vmem_to_hbm [thread:$0]  %s1284, 256, %s1282, %s1269, 64, 64, 4
        $region56: #{tpu_custom_call.1} parent=39 // pred_fallthru
          _
      $region40: #{tpu_custom_call.1} parent=5 // pred_fallthru
        _
      %p1290 = scmp.le.s32.totalorder 2, %s18
      // Predicated region
      $region57: #{tpu_custom_call.1} parent=5 // pred_check
        %p1291 = pneg %p1290
      $region58: #{tpu_custom_call.1} parent=5 // pred_check_branch
        %1293 = sbr.rel (%p1291) target = $region60
      $region59: #{tpu_custom_call.1} parent=5 // pred_region
        %s1294 = ssub.s32 %s18, 2
        // Predicated region
        $region61: #{tpu_custom_call.1} parent=59 // pred_check
          %p1295 = pneg %p157
        $region62: #{tpu_custom_call.1} parent=59 // pred_check_branch
          %1297 = sbr.rel (%p1295) target = $region64
        $region63: #{tpu_custom_call.1} parent=59 // pred_region
          %s1298 = sand.u32 %s142, 1
          %s1299 = scalar_lea.sflag [#allocation5], %s1298
          %s1300 = sand.u32 %s142, 1
          %s1301 = smul.addr %s1300, 16
          %s1302 = scalar_lea.vmem [#allocation9], %s1301
          %1303 = dma.done %s1299, 256
        $region64: #{tpu_custom_call.1} parent=59 // pred_fallthru
          _
      $region60: #{tpu_custom_call.1} parent=5 // pred_fallthru
        _
    $region6: #{tpu_custom_call.1} parent=1 // loop_footer
      %s22 = sadd.s32 1, %s18
    $region7: #{tpu_custom_call.1} parent=1 // loop_footer_branch
      %17 = sbr.rel target = $region3
    $region8: #{tpu_custom_call.1} parent=1 // loop_exit
      _
    %1304 = vsyncpa [#allocation4], 1
    %s1305 = scalar_lea.sflag [#allocation4], 1
    %1306 = vsyncpa %s1305, 1
    %1307 = vsyncpa [#allocation7], 1
    %1308 = vsyncpa [#allocation5], 1
    %s1309 = scalar_lea.sflag [#allocation5], 1
    %1310 = vsyncpa %s1309, 1

</llo_original>
